<compile_context>
chip_gen: v7x
topology: tpu7x:2x2x1
jax: 0.10.0
libtpu: 0.0.40
codegen_flags: <defaults>
</compile_context>

<pallas_src>
import functools

import numpy as np
import jax
import jax.numpy as jnp
from jax.experimental import pallas as pl
from jax.experimental.pallas import tpu as pltpu


def _round_up(x, m):
    return ((x + m - 1) // m) * m


def _fit_tile(pref, extent, quantum):
    """Tile size for one axis: a multiple of `quantum`, <= `pref`, preferring
    an exact divisor of `extent` (itself a multiple of `quantum`) so the
    operand needs no extra pad copy."""
    pref = min(pref, extent)
    pref = max(quantum, (pref // quantum) * quantum)
    if extent % pref == 0:
        return pref
    t = pref - quantum
    while t >= quantum:
        if extent % t == 0:
            if 2 * t >= pref:       # accept the divisor unless it is tiny
                return t
            break
        t -= quantum
    return pref                     # caller pads


def _chip_defaults(x_dtype):
    """Generation-aware default tiles + VMEM limit.
    v5e/v6e have 128 MiB VMEM -> big tiles to cut x/sel HBM re-reads;
    v7x has 64 MiB/TC -> cap the double-buffered working set."""
    vmem = None
    try:
        vmem = getattr(pltpu.get_tpu_info(), "vmem_capacity_bytes", None)
    except Exception:
        vmem = None
    if vmem is None:
        vmem = 64 * 1024 * 1024     # conservative (v7x-sized) fallback
    if vmem >= 100 * 1024 * 1024:   # v5e / v6e
        tm, tn = 1024, 1024
        tk = 2048 if x_dtype == jnp.bfloat16 else 1024
        limit = 96 * 1024 * 1024
    else:                           # v7x
        tm, tn, tk = 1024, 512, 1024
        limit = 40 * 1024 * 1024
    return tm, tn, tk, limit


def _roi_gather_kernel(n_passes, kb_lo_ref, kb_cnt_ref, x_ref, sel_ref, o_ref):
    """One (tm x tn) output tile, accumulated over the banded K axis.

    kb_lo_ref/kb_cnt_ref: SMEM band table (scalar-prefetched).
    x_ref:   [tm, tk] fmri rows at K block kb_lo[j] + kk (clamped).
    sel_ref: [tk, tn] compact bf16 one-hot selection slab for (j, kk).
    o_ref:   [tm, tn] output tile, resident across the kk grid axis.
    """
    j = pl.program_id(1)
    kk = pl.program_id(2)

    @pl.when(kk == 0)
    def _init():
        o_ref[...] = jnp.zeros_like(o_ref)

    # Skip K steps past this tile's band (their sel slabs are all zeros and the
    # clamped index_maps already made their DMAs no-ops).
    @pl.when(kk < kb_cnt_ref[j])
    def _accumulate():
        x = x_ref[...]
        sel = sel_ref[...]
        if n_passes == 1:
            # bf16 input (exact) or "fast" f32 mode (bf16-rounded).
            acc = jnp.dot(x.astype(jnp.bfloat16), sel,
                          preferred_element_type=jnp.float32)
        else:
            # f32 input: explicit hi/lo(/lo2) bf16 split against the 0/1 sel.
            # 2 passes ~ 16 mantissa bits; 3 passes reconstruct f32 exactly.
            acc = jnp.zeros(o_ref.shape, jnp.float32)
            r = x
            for t in range(n_passes):
                p = r.astype(jnp.bfloat16)
                acc = acc + jnp.dot(p, sel, preferred_element_type=jnp.float32)
                if t + 1 < n_passes:
                    r = r - p.astype(jnp.float32)
        # Each output element gets its value from exactly one K block (other
        # blocks contribute exact zeros), so accumulating in o_ref.dtype is
        # exact even for bf16 outputs -> no separate f32 scratch needed.
        o_ref[...] += acc.astype(o_ref.dtype)


def roi_extractor_terms_forward(fmri, roi, *, tm=None, tn=None, tk=None,
                                f32_passes=2, vmem_limit_bytes=None):
    """Pallas implementation of roi_extractor_terms.forward: fmri[:, :, roi].

    fmri: [B, T, Nv] (float32 or bfloat16; other dtypes go through f32).
    roi:  static numpy bool mask of length Nv, or integer voxel indices
          (order and duplicates are honoured, like torch advanced indexing).
    f32_passes: MXU passes for float32 inputs. 2 (default, per perf review)
          ~= 16 mantissa bits, 3 = bit-exact gather, 1 = bf16-rounded.
    Returns [B, T, Nr] in fmri's dtype.
    """
    roi = np.asarray(roi)
    if roi.dtype == np.bool_:
        idx = np.nonzero(roi.reshape(-1))[0].astype(np.int64)
    else:
        idx = roi.reshape(-1).astype(np.int64)
    nr = int(idx.shape[0])

    B, T, Nv = fmri.shape
    m = B * T
    orig_dtype = fmri.dtype

    if nr == 0 or m == 0:
        return jnp.zeros((B, T, nr), dtype=orig_dtype)
    if int(idx.min()) < 0 or int(idx.max()) >= Nv:
        raise ValueError("roi indices out of range")

    # Compute dtype / number of MXU passes.
    if fmri.dtype == jnp.bfloat16:
        x2 = fmri.reshape(m, Nv)
        n_passes = 1
    else:
        x2 = fmri.reshape(m, Nv).astype(jnp.float32)
        n_passes = max(1, min(3, int(f32_passes)))
    c_dtype = x2.dtype
    itemsize = x2.dtype.itemsize

    dtm, dtn, dtk, dlimit = _chip_defaults(c_dtype)
    tm = dtm if tm is None else tm
    tn = dtn if tn is None else tn
    tk = dtk if tk is None else tk
    vmem_limit_bytes = dlimit if vmem_limit_bytes is None else vmem_limit_bytes

    # (8,128)/sublane-pack alignment; prefer tile sizes that divide the padded
    # extents so the [M, Nv] slab rarely needs an extra pad copy.
    pack = 16 if c_dtype == jnp.bfloat16 else 8
    m_al = _round_up(m, pack)
    nv_al = _round_up(Nv, 128)
    nr_al = _round_up(nr, 128)
    tm = _fit_tile(tm, m_al, pack)
    tk = _fit_tile(tk, nv_al, 128)
    tn = _fit_tile(tn, nr_al, 128)

    m_pad = _round_up(m, tm)
    nv_pad = _round_up(Nv, tk)
    nr_pad = _round_up(nr, tn)
    n_j = nr_pad // tn

    if m_pad != m or nv_pad != Nv:
        x2 = jnp.pad(x2, ((0, m_pad - m), (0, nv_pad - Nv)))

    # ---- Band table + compact one-hot selection (host-side, static ROI). ----
    # Output column c lives in tile j = c // tn; the K blocks touched by tile j
    # span the contiguous range [kb_lo[j], kb_lo[j] + kb_cnt[j]).  Only those
    # blocks are visited by the grid's K axis.
    c = np.arange(nr)
    jt = c // tn
    kb = idx // tk
    kb_lo = np.full((n_j,), np.iinfo(np.int64).max, dtype=np.int64)
    kb_hi = np.full((n_j,), -1, dtype=np.int64)
    np.minimum.at(kb_lo, jt, kb)
    np.maximum.at(kb_hi, jt, kb)
    kb_lo = np.where(kb_hi < 0, 0, kb_lo)                # defensive (unused)
    kb_cnt = np.where(kb_hi < 0, 1, kb_hi - kb_lo + 1)
    max_k = int(kb_cnt.max())

    sel_np = np.zeros((n_j, max_k, tk, tn), dtype=np.uint8)
    sel_np[jt, kb - kb_lo[jt], idx - kb * tk, c % tn] = 1
    sel = jnp.asarray(sel_np, dtype=jnp.bfloat16)        # 0/1 exact in bf16

    kb_lo_dev = jnp.asarray(kb_lo.astype(np.int32))
    kb_cnt_dev = jnp.asarray(kb_cnt.astype(np.int32))

    grid = (m_pad // tm, n_j, max_k)

    def x_map(i, j, kk, lo, cnt):
        # Clamp past-the-band steps to the last real block so consecutive grid
        # steps keep the same block index (Pallas skips the re-fetch).
        return (i, lo[j] + jnp.minimum(kk, cnt[j] - 1))

    def sel_map(i, j, kk, lo, cnt):
        return (j, jnp.minimum(kk, cnt[j] - 1), 0, 0)

    def out_map(i, j, kk, lo, cnt):
        return (i, j)

    sum_cnt = int(kb_cnt.sum())
    flops = 2 * m_pad * tk * tn * n_passes * sum_cnt
    bytes_accessed = ((m_pad // tm) * sum_cnt * tm * tk * itemsize    # x band reads
                      + (m_pad // tm) * sum_cnt * tk * tn * 2          # sel reads (bf16)
                      + m_pad * nr_pad * itemsize)                     # output writes
    cost = pl.CostEstimate(flops=int(flops), transcendentals=0,
                           bytes_accessed=int(bytes_accessed))

    out2 = pl.pallas_call(
        functools.partial(_roi_gather_kernel, n_passes),
        out_shape=jax.ShapeDtypeStruct((m_pad, nr_pad), c_dtype),
        grid_spec=pltpu.PrefetchScalarGridSpec(
            num_scalar_prefetch=2,
            grid=grid,
            in_specs=[
                pl.BlockSpec((tm, tk), x_map),
                pl.BlockSpec((None, None, tk, tn), sel_map),
            ],
            out_specs=pl.BlockSpec((tm, tn), out_map),
        ),
        compiler_params=pltpu.CompilerParams(
            dimension_semantics=("parallel", "parallel", "arbitrary"),
            vmem_limit_bytes=int(vmem_limit_bytes),
        ),
        cost_estimate=cost,
    )(kb_lo_dev, kb_cnt_dev, x2, sel)

    out = out2[:m, :nr].reshape(B, T, nr)
    if out.dtype != orig_dtype:
        out = out.astype(orig_dtype)
    return out


if __name__ == "__main__":
    key = jax.random.PRNGKey(0)

    # Small shapes consistent with the module: fmri is [B, T, Nv].
    # Deliberately non-aligned sizes to exercise padding / band paths.
    B, T, Nv = 2, 9, 640
    fmri_f32 = jax.random.normal(key, (B, T, Nv), dtype=jnp.float32)

    # Deterministic ROI "parameter": every 3rd voxel -> 214 voxels.
    roi_mask = np.zeros((Nv,), dtype=bool)
    roi_mask[::3] = True
    ref_idx = np.nonzero(roi_mask)[0]

    # 1) bf16-representable f32 input, chip-default tiles -> exact.
    fmri_snap = fmri_f32.astype(jnp.bfloat16).astype(jnp.float32)
    ref_snap = np.asarray(fmri_snap)[:, :, ref_idx]
    out = jax.block_until_ready(roi_extractor_terms_forward(fmri_snap, roi_mask))
    assert out.shape == (B, T, ref_idx.size), out.shape
    assert out.dtype == fmri_snap.dtype, out.dtype
    np.testing.assert_array_equal(np.asarray(out), ref_snap)

    # 2) genuine f32, forced small tiles (multi-tile banded grid with padded
    #    K steps), f32_passes=3 -> bit-exact torch-indexing semantics.
    ref_f32 = np.asarray(fmri_f32)[:, :, ref_idx]
    out3 = jax.block_until_ready(roi_extractor_terms_forward(
        fmri_f32, roi_mask, tm=8, tn=128, tk=128, f32_passes=3))
    np.testing.assert_array_equal(np.asarray(out3), ref_f32)

    # 3) genuine f32, default 2-pass hi/lo split -> ~16-bit mantissa accuracy.
    out2p = jax.block_until_ready(roi_extractor_terms_forward(
        fmri_f32, roi_mask, tm=8, tn=128, tk=128))
    np.testing.assert_allclose(np.asarray(out2p), ref_f32, rtol=1e-4, atol=1e-6)

    # 4) bf16 input -> single MXU pass, exact in bf16.
    fmri_bf16 = fmri_f32.astype(jnp.bfloat16)
    out_bf = jax.block_until_ready(roi_extractor_terms_forward(fmri_bf16, roi_mask))
    assert out_bf.dtype == jnp.bfloat16, out_bf.dtype
    ref_bf = np.asarray(fmri_bf16.astype(jnp.float32))[:, :, ref_idx]
    np.testing.assert_array_equal(np.asarray(out_bf.astype(jnp.float32)), ref_bf)

    # 5) integer-index ROI (unsorted, with a duplicate), like torch advanced
    #    indexing fmri[:, :, roi].
    roi_idx = np.array([5, 2, 2, 637, 0, 300], dtype=np.int64)
    ref_gather = np.asarray(fmri_snap)[:, :, roi_idx]
    out_idx = jax.block_until_ready(roi_extractor_terms_forward(
        fmri_snap, roi_idx, tm=8, tn=128, tk=128))
    np.testing.assert_array_equal(np.asarray(out_idx), ref_gather)

    print("KERNEL_OK")
</pallas_src>

<mosaic_0001>
module attributes {stable_mosaic.version = 11 : i64} {
  func.func @_roi_gather_kernel(%arg0: i32, %arg1: i32, %arg2: i32, %arg3: memref<1xi32, #tpu.memory_space<smem>>, %arg4: memref<1xi32, #tpu.memory_space<smem>>, %arg5: memref<24x640xf32, #tpu.memory_space<vmem>>, %arg6: memref<1x1x640x256xbf16, #tpu.memory_space<vmem>>, %arg7: memref<24x256xf32, #tpu.memory_space<vmem>>) attributes {dimension_semantics = [#tpu.dimension_semantics<parallel>, #tpu.dimension_semantics<parallel>, #tpu.dimension_semantics<arbitrary>], iteration_bounds = array<i64: 1, 1, 1>, scalar_prefetch = 2 : i64, scratch_operands = 0 : i64, tpu.core_type = #tpu.core_type<tc>, window_params = [{transform_indices = @transform_0, window_bounds = array<i64: 24, 640>}, {transform_indices = @transform_1, window_bounds = array<i64: 1, 1, 640, 256>}, {transform_indices = @transform_2, window_bounds = array<i64: 24, 256>}]} {
    %c0_i32 = arith.constant 0 : i32
    %0 = arith.cmpi eq, %arg2, %c0_i32 : i32
    %1 = arith.extui %0 : i1 to i32
    %c0_i32_0 = arith.constant 0 : i32
    %2 = arith.cmpi ne, %1, %c0_i32_0 : i32
    scf.if %2 {
      %cst = arith.constant 0.000000e+00 : f32
      %8 = vector.broadcast %cst : f32 to vector<24x256xf32>
      %c0 = arith.constant 0 : index
      %c0_2 = arith.constant 0 : index
      %9 = vector.load %arg7[%c0, %c0_2] : memref<24x256xf32, #tpu.memory_space<vmem>>, vector<24x256xf32>
      tpu.vector_store %arg7[%c0, %c0_2], %8 {strides = array<i32>} : memref<24x256xf32, #tpu.memory_space<vmem>>, vector<24x256xf32>,
    } else {
    }
    %3 = arith.index_cast %arg1 : i32 to index
    %4 = memref.load %arg4[%3] : memref<1xi32, #tpu.memory_space<smem>>
    %5 = arith.cmpi slt, %arg2, %4 : i32
    %6 = arith.extui %5 : i1 to i32
    %c0_i32_1 = arith.constant 0 : i32
    %7 = arith.cmpi ne, %6, %c0_i32_1 : i32
    scf.if %7 {
      %c0 = arith.constant 0 : index
      %c0_2 = arith.constant 0 : index
      %8 = vector.load %arg5[%c0, %c0_2] : memref<24x640xf32, #tpu.memory_space<vmem>>, vector<24x640xf32>
      %c0_3 = arith.constant 0 : index
      %c0_4 = arith.constant 0 : index
      %c0_5 = arith.constant 0 : index
      %c0_6 = arith.constant 0 : index
      %9 = vector.load %arg6[%c0_3, %c0_4, %c0_5, %c0_6] : memref<1x1x640x256xbf16, #tpu.memory_space<vmem>>, vector<1x1x640x256xbf16>
      %10 = vector.shape_cast %9 : vector<1x1x640x256xbf16> to vector<640x256xbf16>
      %cst = arith.constant 0.000000e+00 : f32
      %11 = vector.broadcast %cst : f32 to vector<24x256xf32>
      %12 = arith.truncf %8 : vector<24x640xf32> to vector<24x640xbf16>
      %cst_7 = arith.constant dense<0.000000e+00> : vector<24x256xf32>
      %13 = tpu.matmul %12, %10, %cst_7 {dimension_numbers = #tpu.dot_dimension_numbers<[1], [0], [0], [1], [0, 0, 1, 1], [], []>} : vector<24x640xbf16>, vector<640x256xbf16>, vector<24x256xf32> -> vector<24x256xf32>
      %14 = arith.addf %11, %13 : vector<24x256xf32>
      %15 = arith.extf %12 : vector<24x640xbf16> to vector<24x640xf32>
      %16 = arith.subf %8, %15 : vector<24x640xf32>
      %17 = arith.truncf %16 : vector<24x640xf32> to vector<24x640xbf16>
      %cst_8 = arith.constant dense<0.000000e+00> : vector<24x256xf32>
      %18 = tpu.matmul %17, %10, %cst_8 {dimension_numbers = #tpu.dot_dimension_numbers<[1], [0], [0], [1], [0, 0, 1, 1], [], []>} : vector<24x640xbf16>, vector<640x256xbf16>, vector<24x256xf32> -> vector<24x256xf32>
      %19 = arith.addf %14, %18 : vector<24x256xf32>
      %c0_9 = arith.constant 0 : index
      %c0_10 = arith.constant 0 : index
      %20 = vector.load %arg7[%c0_9, %c0_10] : memref<24x256xf32, #tpu.memory_space<vmem>>, vector<24x256xf32>
      %21 = arith.addf %20, %19 : vector<24x256xf32>
      %c0_11 = arith.constant 0 : index
      %c0_12 = arith.constant 0 : index
      %22 = vector.load %arg7[%c0_11, %c0_12] : memref<24x256xf32, #tpu.memory_space<vmem>>, vector<24x256xf32>
      tpu.vector_store %arg7[%c0_11, %c0_12], %21 {strides = array<i32>} : memref<24x256xf32, #tpu.memory_space<vmem>>, vector<24x256xf32>,
    } else {
    }
    return
  }
  func.func @transform_0(%arg0: i32, %arg1: i32, %arg2: i32, %arg3: memref<1xi32, #tpu.memory_space<smem>>, %arg4: memref<1xi32, #tpu.memory_space<smem>>) -> (i32, i32) {
    %0 = arith.index_cast %arg1 : i32 to index
    %1 = memref.load %arg3[%0] : memref<1xi32, #tpu.memory_space<smem>>
    %2 = arith.index_cast %arg1 : i32 to index
    %3 = memref.load %arg4[%2] : memref<1xi32, #tpu.memory_space<smem>>
    %c1_i32 = arith.constant 1 : i32
    %4 = arith.subi %3, %c1_i32 : i32
    %5 = arith.minsi %arg2, %4 : i32
    %6 = arith.addi %1, %5 : i32
    %c0_i32 = arith.constant 0 : i32
    return %arg0, %6 : i32, i32
  }
  func.func @transform_1(%arg0: i32, %arg1: i32, %arg2: i32, %arg3: memref<1xi32, #tpu.memory_space<smem>>, %arg4: memref<1xi32, #tpu.memory_space<smem>>) -> (i32, i32, i32, i32) {
    %0 = arith.index_cast %arg1 : i32 to index
    %1 = memref.load %arg4[%0] : memref<1xi32, #tpu.memory_space<smem>>
    %c1_i32 = arith.constant 1 : i32
    %2 = arith.subi %1, %c1_i32 : i32
    %3 = arith.minsi %arg2, %2 : i32
    %c0_i32 = arith.constant 0 : i32
    %c0_i32_0 = arith.constant 0 : i32
    %c0_i32_1 = arith.constant 0 : i32
    return %arg1, %3, %c0_i32, %c0_i32_0 : i32, i32, i32, i32
  }
  func.func @transform_2(%arg0: i32, %arg1: i32, %arg2: i32, %arg3: memref<1xi32, #tpu.memory_space<smem>>, %arg4: memref<1xi32, #tpu.memory_space<smem>>) -> (i32, i32) {
    %c0_i32 = arith.constant 0 : i32
    return %arg0, %arg1 : i32, i32
  }
}

</mosaic_0001>

<llo_original>
// kernel: tpu_custom_call.1
$region0: #{tpu_custom_call.1}
  #allocation0 [shape = 'u32[]', space=smem, size = 0x4, offset = 0x4, fixed_abs, tag = 'smem constant byte address 0x4 - core index']
  #allocation1 [shape = 'u32[144,128]{1,0:T(1,128)}', space=vmem, size = 0x12000, scoped, tag = 'internal scratch']
  #allocation2 [shape = 's32[1]{0}', space=sflag, size = 0x4, scoped, tag = 'scoped memory for tpu_custom_call.1']
  #allocation3 [shape = 's32[1]{0:T(128)S(6)}', space=smem, size = 0x200, scoped, tag = 'prefetched SMEM operand 0']
  #allocation4 [shape = 's32[1]{0:T(128)S(6)}', space=smem, size = 0x200, scoped, tag = 'prefetched SMEM operand 1']
  %s0 = inlined_call_operand.<no memory space> [shape: s32[1], index: 0, kind: input, shape index: {}]
  %s1 = inlined_call_operand.<no memory space> [shape: s32[1], index: 1, kind: input, shape index: {}]
  %s2 = inlined_call_operand.hbm [shape: f32[24,640], index: 2, kind: input, shape index: {}]
  %s3 = inlined_call_operand.hbm [shape: bf16[1,1,640,256], index: 3, kind: input, shape index: {}]
  %s4 = inlined_call_operand.hbm [shape: f32[24,256], index: 4, kind: output, shape index: {}]
  %s5 = sld [smem:[#allocation0]]
  $region34: #{tpu_custom_call.1} parent=0
    _
  %s7 = ssub.s32 1, %s5
  %s8 = scalar_select 0, %s7, %s5
  %9 = sst [smem:[#allocation3]] %s0
  %10 = sst [smem:[#allocation4]] %s1
  $region1: #{tpu_custom_call.1} parent=0
    #allocation5 [shape = 'u8[61440]{0}', space=vmem, size = 0xf000, scoped, tag = 'input window, operand 2, single buffered']
    #allocation6 [shape = 's32[1]{0}', space=sflag, size = 0x4, scoped, tag = 'scoped memory for tpu_custom_call.1']
    #allocation7 [shape = 's32[1]{0}', space=sflag, size = 0x4, scoped, tag = 'scoped memory for tpu_custom_call.1']
    #allocation8 [shape = 'u8[327680]{0}', space=vmem, size = 0x50000, scoped, tag = 'input window, operand 3, single buffered']
    #allocation9 [shape = 's32[1]{0}', space=sflag, size = 0x4, scoped, tag = 'scoped memory for tpu_custom_call.1']
    #allocation10 [shape = 'u8[24576]{0}', space=vmem, size = 0x6000, scoped, tag = 'output window, operand 0, single buffered']
    %11 = vsyncpa [#allocation6], 0
    %12 = vsyncpa [#allocation9], 0
    %13 = vsyncpa [#allocation7], 0
    // Predicated region
    $region2: #{tpu_custom_call.1} parent=1 // pred_check
      _
    $region3: #{tpu_custom_call.1} parent=1 // pred_check_branch
      %15 = sbr.rel (0) target = $region5
    $region4: #{tpu_custom_call.1} parent=1 // pred_region
      %s16 = sld [smem:[#allocation3]]
      %s17 = sld [smem:[#allocation4]]
      %s18 = ssub.s32 %s17, 1
      %p19 = scmp.lt.s32.totalorder 0, %s18
      %s20 = scalar_select %p19, 0, %s18
      %s21 = sadd.s32 %s16, %s20
      %s22 = smul.u32 5, %s21
      %s24 = ssub.s32 1920, 1920
      %25 = vsyncadd [#allocation6], %s24
      %s26 = smul.addr %s22, 128
      %s27 = scalar_lea.hbm %s2, %s26
      %s28 = sshll.u32 [#allocation5], 4
      %s29 = int_to_ptr.vmem [resolvable:$true] %s28
      %34 = dma.hbm_to_vmem [thread:$0]  %s27, 1920, %s29, [#allocation6], 640, 640, 40
    $region5: #{tpu_custom_call.1} parent=1 // pred_fallthru
      _
    // Predicated region
    $region6: #{tpu_custom_call.1} parent=1 // pred_check
      _
    $region7: #{tpu_custom_call.1} parent=1 // pred_check_branch
      %36 = sbr.rel (0) target = $region9
    $region8: #{tpu_custom_call.1} parent=1 // pred_region
      %s37 = sld [smem:[#allocation4]]
      %s38 = ssub.s32 %s37, 1
      %p39 = scmp.lt.s32.totalorder 0, %s38
      %s40 = scalar_select %p39, 0, %s38
      %s42 = ssub.s32 10240, 10240
      %43 = vsyncadd [#allocation9], %s42
      %s44 = smul.addr %s40, 160
      %s45 = smul.addr %s44, 64
      %s46 = scalar_lea.hbm %s3, %s45
      %s47 = sshll.u32 [#allocation8], 4
      %s48 = int_to_ptr.vmem [resolvable:$true] %s47
      %53 = dma.hbm_to_vmem [thread:$0]  %s46, 10240, %s48, [#allocation9], 128, 128, 8
    $region9: #{tpu_custom_call.1} parent=1 // pred_fallthru
      _
    // Predicated region
    $region10: #{tpu_custom_call.1} parent=1 // pred_check
      _
    $region11: #{tpu_custom_call.1} parent=1 // pred_check_branch
      %55 = sbr.rel (0) target = $region13
    $region12: #{tpu_custom_call.1} parent=1 // pred_region
      %56 = dma.done [#allocation6], 1920
    $region13: #{tpu_custom_call.1} parent=1 // pred_fallthru
      _
    // Predicated region
    $region14: #{tpu_custom_call.1} parent=1 // pred_check
      _
    $region15: #{tpu_custom_call.1} parent=1 // pred_check_branch
      %58 = sbr.rel (0) target = $region17
    $region16: #{tpu_custom_call.1} parent=1 // pred_region
      %59 = dma.done [#allocation9], 10240
    $region17: #{tpu_custom_call.1} parent=1 // pred_fallthru
      _
    %s60 = sld [smem:[#allocation3]]
    %s61 = sld [smem:[#allocation4]]
    %s62 = ssub.s32 %s61, 1
    %p63 = scmp.lt.s32.totalorder 0, %s62
    %s64 = scalar_select %p63, 0, %s62
    %s65 = sadd.s32 %s60, %s64
    %s66 = smul.u32 5, %s65
    %s67 = sld [smem:[#allocation4]]
    %s68 = ssub.s32 %s67, 1
    %p69 = scmp.lt.s32.totalorder 0, %s68
    %s70 = scalar_select %p69, 0, %s68
    %p72 = scmp.eq.s32.totalorder 0, 0
    // Predicated region
    $region18: #{tpu_custom_call.1} parent=1 // pred_check
      %p73 = pneg %p72
    $region19: #{tpu_custom_call.1} parent=1 // pred_check_branch
      %75 = sbr.rel (%p73) target = $region21
    $region20: #{tpu_custom_call.1} parent=1 // pred_region
      %76 = vst [vmem:[#allocation10] sm:$0xff] 0.0
      %77 = vst [vmem:[#allocation10 + $0x8] sm:$0xff] 0.0
      %78 = vst [vmem:[#allocation10 + $0x10] sm:$0xff] 0.0
      %79 = vst [vmem:[#allocation10 + $0x18] sm:$0xff] 0.0
      %80 = vst [vmem:[#allocation10 + $0x20] sm:$0xff] 0.0
      %81 = vst [vmem:[#allocation10 + $0x28] sm:$0xff] 0.0
    $region21: #{tpu_custom_call.1} parent=1 // pred_fallthru
      _
    %s82 = sld [smem:[#allocation4]]
    %p83 = scmp.lt.s32.totalorder 0, %s82
    // Predicated region
    $region22: #{tpu_custom_call.1} parent=1 // pred_check
      %p84 = pneg %p83
    $region23: #{tpu_custom_call.1} parent=1 // pred_check_branch
      %86 = sbr.rel (%p84) target = $region25
    $region24: #{tpu_custom_call.1} parent=1 // pred_region
      %v87 = vld [vmem:[#allocation5] sm:$0xff]
      %v88 = vld [vmem:[#allocation5 + $0x8] sm:$0xff]
      %v89 = vld [vmem:[#allocation5 + $0x10] sm:$0xff]
      %v90 = vld [vmem:[#allocation5 + $0x18] sm:$0xff]
      %v91 = vld [vmem:[#allocation5 + $0x20] sm:$0xff]
      %v92 = vld [vmem:[#allocation5 + $0x28] sm:$0xff]
      %v93 = vld [vmem:[#allocation5 + $0x30] sm:$0xff]
      %v94 = vld [vmem:[#allocation5 + $0x38] sm:$0xff]
      %v95 = vld [vmem:[#allocation5 + $0x40] sm:$0xff]
      %v96 = vld [vmem:[#allocation5 + $0x48] sm:$0xff]
      %v97 = vld [vmem:[#allocation5 + $0x50] sm:$0xff]
      %v98 = vld [vmem:[#allocation5 + $0x58] sm:$0xff]
      %v99 = vld [vmem:[#allocation5 + $0x60] sm:$0xff]
      %v100 = vld [vmem:[#allocation5 + $0x68] sm:$0xff]
      %v101 = vld [vmem:[#allocation5 + $0x70] sm:$0xff]
      %v102 = vld [vmem:[#allocation8] sm:$0xff]
      %v103 = vld [vmem:[#allocation8 + $0x8] sm:$0xff]
      %v104 = vld [vmem:[#allocation8 + $0x10] sm:$0xff]
      %v105 = vld [vmem:[#allocation8 + $0x18] sm:$0xff]
      %v106 = vld [vmem:[#allocation8 + $0x20] sm:$0xff]
      %v107 = vld [vmem:[#allocation8 + $0x28] sm:$0xff]
      %v108 = vld [vmem:[#allocation8 + $0x30] sm:$0xff]
      %v109 = vld [vmem:[#allocation8 + $0x38] sm:$0xff]
      %v110 = vld [vmem:[#allocation8 + $0x40] sm:$0xff]
      %v111 = vld [vmem:[#allocation8 + $0x48] sm:$0xff]
      %v112 = vld [vmem:[#allocation8 + $0x50] sm:$0xff]
      %v113 = vld [vmem:[#allocation8 + $0x58] sm:$0xff]
      %v114 = vld [vmem:[#allocation8 + $0x60] sm:$0xff]
      %v115 = vld [vmem:[#allocation8 + $0x68] sm:$0xff]
      %v116 = vld [vmem:[#allocation8 + $0x70] sm:$0xff]
      %v117 = vld [vmem:[#allocation8 + $0x78] sm:$0xff]
      %v118 = vld [vmem:[#allocation8 + $0x80] sm:$0xff]
      %v119 = vld [vmem:[#allocation8 + $0x88] sm:$0xff]
      %v120 = vld [vmem:[#allocation8 + $0x90] sm:$0xff]
      %v121 = vld [vmem:[#allocation8 + $0x98] sm:$0xff]
      %v122 = vld [vmem:[#allocation8 + $0xa0] sm:$0xff]
      %v123 = vld [vmem:[#allocation8 + $0xa8] sm:$0xff]
      %v124 = vld [vmem:[#allocation8 + $0xb0] sm:$0xff]
      %v125 = vld [vmem:[#allocation8 + $0xb8] sm:$0xff]
      %v126 = vld [vmem:[#allocation8 + $0xc0] sm:$0xff]
      %v127 = vld [vmem:[#allocation8 + $0xc8] sm:$0xff]
      %v128 = vld [vmem:[#allocation8 + $0xd0] sm:$0xff]
      %v129 = vld [vmem:[#allocation8 + $0xd8] sm:$0xff]
      %v130 = vld [vmem:[#allocation8 + $0xe0] sm:$0xff]
      %v131 = vld [vmem:[#allocation8 + $0xe8] sm:$0xff]
      %v132 = vld [vmem:[#allocation8 + $0xf0] sm:$0xff]
      %v133 = vld [vmem:[#allocation8 + $0xf8] sm:$0xff]
      %v134 = vld [vmem:[#allocation8 + $0x100] sm:$0xff]
      %v135 = vld [vmem:[#allocation8 + $0x108] sm:$0xff]
      %v136 = vld [vmem:[#allocation8 + $0x110] sm:$0xff]
      %v137 = vld [vmem:[#allocation8 + $0x118] sm:$0xff]
      %v138 = vld [vmem:[#allocation8 + $0x120] sm:$0xff]
      %v139 = vld [vmem:[#allocation8 + $0x128] sm:$0xff]
      %v140 = vld [vmem:[#allocation8 + $0x130] sm:$0xff]
      %v141 = vld [vmem:[#allocation8 + $0x138] sm:$0xff]
      %v142 = vld [vmem:[#allocation8 + $0x140] sm:$0xff]
      %v143 = vld [vmem:[#allocation8 + $0x148] sm:$0xff]
      %v144 = vld [vmem:[#allocation8 + $0x150] sm:$0xff]
      %v145 = vld [vmem:[#allocation8 + $0x158] sm:$0xff]
      %v146 = vld [vmem:[#allocation8 + $0x160] sm:$0xff]
      %v147 = vld [vmem:[#allocation8 + $0x168] sm:$0xff]
      %v148 = vld [vmem:[#allocation8 + $0x170] sm:$0xff]
      %v149 = vld [vmem:[#allocation8 + $0x178] sm:$0xff]
      %v150 = vld [vmem:[#allocation8 + $0x180] sm:$0xff]
      %v151 = vld [vmem:[#allocation8 + $0x188] sm:$0xff]
      %v152 = vld [vmem:[#allocation8 + $0x190] sm:$0xff]
      %v153 = vld [vmem:[#allocation8 + $0x198] sm:$0xff]
      %v154 = vld [vmem:[#allocation8 + $0x1a0] sm:$0xff]
      %v155 = vld [vmem:[#allocation8 + $0x1a8] sm:$0xff]
      %v156 = vld [vmem:[#allocation8 + $0x1b0] sm:$0xff]
      %v157 = vld [vmem:[#allocation8 + $0x1b8] sm:$0xff]
      %v158 = vld [vmem:[#allocation8 + $0x1c0] sm:$0xff]
      %v159 = vld [vmem:[#allocation8 + $0x1c8] sm:$0xff]
      %v160 = vld [vmem:[#allocation8 + $0x1d0] sm:$0xff]
      %v161 = vld [vmem:[#allocation8 + $0x1d8] sm:$0xff]
      %v162 = vld [vmem:[#allocation8 + $0x1e0] sm:$0xff]
      %v163 = vld [vmem:[#allocation8 + $0x1e8] sm:$0xff]
      %v164 = vld [vmem:[#allocation8 + $0x1f0] sm:$0xff]
      %v165 = vld [vmem:[#allocation8 + $0x1f8] sm:$0xff]
      %v166 = vld [vmem:[#allocation8 + $0x200] sm:$0xff]
      %v167 = vld [vmem:[#allocation8 + $0x208] sm:$0xff]
      %v168 = vld [vmem:[#allocation8 + $0x210] sm:$0xff]
      %v169 = vld [vmem:[#allocation8 + $0x218] sm:$0xff]
      %v170 = vld [vmem:[#allocation8 + $0x220] sm:$0xff]
      %v171 = vld [vmem:[#allocation8 + $0x228] sm:$0xff]
      %v172 = vld [vmem:[#allocation8 + $0x230] sm:$0xff]
      %v173 = vld [vmem:[#allocation8 + $0x238] sm:$0xff]
      %v174 = vld [vmem:[#allocation8 + $0x240] sm:$0xff]
      %v175 = vld [vmem:[#allocation8 + $0x248] sm:$0xff]
      %v176 = vld [vmem:[#allocation8 + $0x250] sm:$0xff]
      %v177 = vld [vmem:[#allocation8 + $0x258] sm:$0xff]
      %v178 = vld [vmem:[#allocation8 + $0x260] sm:$0xff]
      %v179 = vld [vmem:[#allocation8 + $0x268] sm:$0xff]
      %v180 = vld [vmem:[#allocation8 + $0x270] sm:$0xff]
      %v181 = vld [vmem:[#allocation8 + $0x278] sm:$0xff]
      %v182 = vpack.c.bf16 %v92, %v87
      %v183 = vpack.c.bf16 %v93, %v88
      %v184 = vpack.c.bf16 %v94, %v89
      %v185 = vpack.c.bf16 %v95, %v90
      %v186 = vpack.c.bf16 %v96, %v91
      %v187 = vpack.c.bf16 %v97, %v97
      %v188 = vpack.c.bf16 %v98, %v98
      %v189 = vpack.c.bf16 %v99, %v99
      %v190 = vpack.c.bf16 %v100, %v100
      %v191 = vpack.c.bf16 %v101, %v101
      %v192 = vunpack.c.l.bf16 %v182
      %v193 = vunpack.c.l.bf16 %v183
      %v194 = vunpack.c.l.bf16 %v184
      %v195 = vunpack.c.l.bf16 %v185
      %v196 = vunpack.c.l.bf16 %v186
      %v197 = vunpack.c.h.bf16 %v182
      %v198 = vunpack.c.h.bf16 %v183
      %v199 = vunpack.c.h.bf16 %v184
      %v200 = vunpack.c.h.bf16 %v185
      %v201 = vunpack.c.h.bf16 %v186
      %v202 = vunpack.c.l.bf16 %v187
      %v203 = vunpack.c.l.bf16 %v188
      %v204 = vunpack.c.l.bf16 %v189
      %v205 = vunpack.c.l.bf16 %v190
      %v206 = vunpack.c.l.bf16 %v191
      %v207 = vsub.f32 %v87, %v192
      %v208 = vsub.f32 %v88, %v193
      %v209 = vsub.f32 %v89, %v194
      %v210 = vsub.f32 %v90, %v195
      %v211 = vsub.f32 %v91, %v196
      %v212 = vsub.f32 %v92, %v197
      %v213 = vsub.f32 %v93, %v198
      %v214 = vsub.f32 %v94, %v199
      %v215 = vsub.f32 %v95, %v200
      %v216 = vsub.f32 %v96, %v201
      %v217 = vsub.f32 %v97, %v202
      %v218 = vsub.f32 %v98, %v203
      %v219 = vsub.f32 %v99, %v204
      %v220 = vsub.f32 %v100, %v205
      %v221 = vsub.f32 %v101, %v206
      %v222 = vpack.c.bf16 %v212, %v207
      %v223 = vpack.c.bf16 %v213, %v208
      %v224 = vpack.c.bf16 %v214, %v209
      %v225 = vpack.c.bf16 %v215, %v210
      %v226 = vpack.c.bf16 %v216, %v211
      %v227 = vpack.c.bf16 %v217, %v217
      %v228 = vpack.c.bf16 %v218, %v218
      %v229 = vpack.c.bf16 %v219, %v219
      %v230 = vpack.c.bf16 %v220, %v220
      %v231 = vpack.c.bf16 %v221, %v221
      %v312 = vunpack.c.l.b16 %v102
      %v313 = vunpack.c.h.b16 %v102
      %v314 = vunpack.c.l.b16 %v103
      %v315 = vunpack.c.h.b16 %v103
      %v316 = vunpack.c.l.b16 %v104
      %v317 = vunpack.c.h.b16 %v104
      %v318 = vunpack.c.l.b16 %v105
      %v319 = vunpack.c.h.b16 %v105
      %v320 = vunpack.c.l.b16 %v106
      %v321 = vunpack.c.h.b16 %v106
      %v322 = vunpack.c.l.b16 %v107
      %v323 = vunpack.c.h.b16 %v107
      %v324 = vunpack.c.l.b16 %v108
      %v325 = vunpack.c.h.b16 %v108
      %v326 = vunpack.c.l.b16 %v109
      %v327 = vunpack.c.h.b16 %v109
      %v328 = vunpack.c.l.b16 %v110
      %v329 = vunpack.c.h.b16 %v110
      %v330 = vunpack.c.l.b16 %v111
      %v331 = vunpack.c.h.b16 %v111
      %v332 = vunpack.c.l.b16 %v112
      %v333 = vunpack.c.h.b16 %v112
      %v334 = vunpack.c.l.b16 %v113
      %v335 = vunpack.c.h.b16 %v113
      %v336 = vunpack.c.l.b16 %v114
      %v337 = vunpack.c.h.b16 %v114
      %v338 = vunpack.c.l.b16 %v115
      %v339 = vunpack.c.h.b16 %v115
      %v340 = vunpack.c.l.b16 %v116
      %v341 = vunpack.c.h.b16 %v116
      %v342 = vunpack.c.l.b16 %v117
      %v343 = vunpack.c.h.b16 %v117
      %v344 = vunpack.c.l.b16 %v118
      %v345 = vunpack.c.h.b16 %v118
      %v346 = vunpack.c.l.b16 %v119
      %v347 = vunpack.c.h.b16 %v119
      %v348 = vunpack.c.l.b16 %v120
      %v349 = vunpack.c.h.b16 %v120
      %v350 = vunpack.c.l.b16 %v121
      %v351 = vunpack.c.h.b16 %v121
      %v352 = vunpack.c.l.b16 %v122
      %v353 = vunpack.c.h.b16 %v122
      %v354 = vunpack.c.l.b16 %v123
      %v355 = vunpack.c.h.b16 %v123
      %v356 = vunpack.c.l.b16 %v124
      %v357 = vunpack.c.h.b16 %v124
      %v358 = vunpack.c.l.b16 %v125
      %v359 = vunpack.c.h.b16 %v125
      %v360 = vunpack.c.l.b16 %v126
      %v361 = vunpack.c.h.b16 %v126
      %v362 = vunpack.c.l.b16 %v127
      %v363 = vunpack.c.h.b16 %v127
      %v364 = vunpack.c.l.b16 %v128
      %v365 = vunpack.c.h.b16 %v128
      %v366 = vunpack.c.l.b16 %v129
      %v367 = vunpack.c.h.b16 %v129
      %v368 = vunpack.c.l.b16 %v130
      %v369 = vunpack.c.h.b16 %v130
      %v370 = vunpack.c.l.b16 %v131
      %v371 = vunpack.c.h.b16 %v131
      %v372 = vunpack.c.l.b16 %v132
      %v373 = vunpack.c.h.b16 %v132
      %v374 = vunpack.c.l.b16 %v133
      %v375 = vunpack.c.h.b16 %v133
      %v376 = vunpack.c.l.b16 %v134
      %v377 = vunpack.c.h.b16 %v134
      %v378 = vunpack.c.l.b16 %v135
      %v379 = vunpack.c.h.b16 %v135
      %v380 = vunpack.c.l.b16 %v136
      %v381 = vunpack.c.h.b16 %v136
      %v382 = vunpack.c.l.b16 %v137
      %v383 = vunpack.c.h.b16 %v137
      %v384 = vunpack.c.l.b16 %v138
      %v385 = vunpack.c.h.b16 %v138
      %v386 = vunpack.c.l.b16 %v139
      %v387 = vunpack.c.h.b16 %v139
      %v388 = vunpack.c.l.b16 %v140
      %v389 = vunpack.c.h.b16 %v140
      %v390 = vunpack.c.l.b16 %v141
      %v391 = vunpack.c.h.b16 %v141
      %v392 = vunpack.c.l.b16 %v142
      %v393 = vunpack.c.h.b16 %v142
      %v394 = vunpack.c.l.b16 %v143
      %v395 = vunpack.c.h.b16 %v143
      %v396 = vunpack.c.l.b16 %v144
      %v397 = vunpack.c.h.b16 %v144
      %v398 = vunpack.c.l.b16 %v145
      %v399 = vunpack.c.h.b16 %v145
      %v400 = vunpack.c.l.b16 %v146
      %v401 = vunpack.c.h.b16 %v146
      %v402 = vunpack.c.l.b16 %v147
      %v403 = vunpack.c.h.b16 %v147
      %v404 = vunpack.c.l.b16 %v148
      %v405 = vunpack.c.h.b16 %v148
      %v406 = vunpack.c.l.b16 %v149
      %v407 = vunpack.c.h.b16 %v149
      %v408 = vunpack.c.l.b16 %v150
      %v409 = vunpack.c.h.b16 %v150
      %v410 = vunpack.c.l.b16 %v151
      %v411 = vunpack.c.h.b16 %v151
      %v412 = vunpack.c.l.b16 %v152
      %v413 = vunpack.c.h.b16 %v152
      %v414 = vunpack.c.l.b16 %v153
      %v415 = vunpack.c.h.b16 %v153
      %v416 = vunpack.c.l.b16 %v154
      %v417 = vunpack.c.h.b16 %v154
      %v418 = vunpack.c.l.b16 %v155
      %v419 = vunpack.c.h.b16 %v155
      %v420 = vunpack.c.l.b16 %v156
      %v421 = vunpack.c.h.b16 %v156
      %v422 = vunpack.c.l.b16 %v157
      %v423 = vunpack.c.h.b16 %v157
      %v424 = vunpack.c.l.b16 %v158
      %v425 = vunpack.c.h.b16 %v158
      %v426 = vunpack.c.l.b16 %v159
      %v427 = vunpack.c.h.b16 %v159
      %v428 = vunpack.c.l.b16 %v160
      %v429 = vunpack.c.h.b16 %v160
      %v430 = vunpack.c.l.b16 %v161
      %v431 = vunpack.c.h.b16 %v161
      %v432 = vunpack.c.l.b16 %v162
      %v433 = vunpack.c.h.b16 %v162
      %v434 = vunpack.c.l.b16 %v163
      %v435 = vunpack.c.h.b16 %v163
      %v436 = vunpack.c.l.b16 %v164
      %v437 = vunpack.c.h.b16 %v164
      %v438 = vunpack.c.l.b16 %v165
      %v439 = vunpack.c.h.b16 %v165
      %v440 = vunpack.c.l.b16 %v166
      %v441 = vunpack.c.h.b16 %v166
      %v442 = vunpack.c.l.b16 %v167
      %v443 = vunpack.c.h.b16 %v167
      %v444 = vunpack.c.l.b16 %v168
      %v445 = vunpack.c.h.b16 %v168
      %v446 = vunpack.c.l.b16 %v169
      %v447 = vunpack.c.h.b16 %v169
      %v448 = vunpack.c.l.b16 %v170
      %v449 = vunpack.c.h.b16 %v170
      %v450 = vunpack.c.l.b16 %v171
      %v451 = vunpack.c.h.b16 %v171
      %v452 = vunpack.c.l.b16 %v172
      %v453 = vunpack.c.h.b16 %v172
      %v454 = vunpack.c.l.b16 %v173
      %v455 = vunpack.c.h.b16 %v173
      %v456 = vunpack.c.l.b16 %v174
      %v457 = vunpack.c.h.b16 %v174
      %v458 = vunpack.c.l.b16 %v175
      %v459 = vunpack.c.h.b16 %v175
      %v460 = vunpack.c.l.b16 %v176
      %v461 = vunpack.c.h.b16 %v176
      %v462 = vunpack.c.l.b16 %v177
      %v463 = vunpack.c.h.b16 %v177
      %v464 = vunpack.c.l.b16 %v178
      %v465 = vunpack.c.h.b16 %v178
      %v466 = vunpack.c.l.b16 %v179
      %v467 = vunpack.c.h.b16 %v179
      %v468 = vunpack.c.l.b16 %v180
      %v469 = vunpack.c.h.b16 %v180
      %v470 = vunpack.c.l.b16 %v181
      %v471 = vunpack.c.h.b16 %v181
      %v472 = vpack.c.b16 %v314, %v312
      %v473 = vpack.c.b16 %v315, %v313
      %v474 = vpack.c.b16 %v318, %v316
      %v475 = vpack.c.b16 %v319, %v317
      %v476 = vpack.c.b16 %v322, %v320
      %v477 = vpack.c.b16 %v323, %v321
      %v478 = vpack.c.b16 %v326, %v324
      %v479 = vpack.c.b16 %v327, %v325
      %v480 = vpack.c.b16 %v330, %v328
      %v481 = vpack.c.b16 %v331, %v329
      %v482 = vpack.c.b16 %v334, %v332
      %v483 = vpack.c.b16 %v335, %v333
      %v484 = vpack.c.b16 %v338, %v336
      %v485 = vpack.c.b16 %v339, %v337
      %v486 = vpack.c.b16 %v342, %v340
      %v487 = vpack.c.b16 %v343, %v341
      %v488 = vpack.c.b16 %v346, %v344
      %v489 = vpack.c.b16 %v347, %v345
      %v490 = vpack.c.b16 %v350, %v348
      %v491 = vpack.c.b16 %v351, %v349
      %v492 = vpack.c.b16 %v354, %v352
      %v493 = vpack.c.b16 %v355, %v353
      %v494 = vpack.c.b16 %v358, %v356
      %v495 = vpack.c.b16 %v359, %v357
      %v496 = vpack.c.b16 %v362, %v360
      %v497 = vpack.c.b16 %v363, %v361
      %v498 = vpack.c.b16 %v366, %v364
      %v499 = vpack.c.b16 %v367, %v365
      %v500 = vpack.c.b16 %v370, %v368
      %v501 = vpack.c.b16 %v371, %v369
      %v502 = vpack.c.b16 %v374, %v372
      %v503 = vpack.c.b16 %v375, %v373
      %v504 = vpack.c.b16 %v378, %v376
      %v505 = vpack.c.b16 %v379, %v377
      %v506 = vpack.c.b16 %v382, %v380
      %v507 = vpack.c.b16 %v383, %v381
      %v508 = vpack.c.b16 %v386, %v384
      %v509 = vpack.c.b16 %v387, %v385
      %v510 = vpack.c.b16 %v390, %v388
      %v511 = vpack.c.b16 %v391, %v389
      %v512 = vpack.c.b16 %v394, %v392
      %v513 = vpack.c.b16 %v395, %v393
      %v514 = vpack.c.b16 %v398, %v396
      %v515 = vpack.c.b16 %v399, %v397
      %v516 = vpack.c.b16 %v402, %v400
      %v517 = vpack.c.b16 %v403, %v401
      %v518 = vpack.c.b16 %v406, %v404
      %v519 = vpack.c.b16 %v407, %v405
      %v520 = vpack.c.b16 %v410, %v408
      %v521 = vpack.c.b16 %v411, %v409
      %v522 = vpack.c.b16 %v414, %v412
      %v523 = vpack.c.b16 %v415, %v413
      %v524 = vpack.c.b16 %v418, %v416
      %v525 = vpack.c.b16 %v419, %v417
      %v526 = vpack.c.b16 %v422, %v420
      %v527 = vpack.c.b16 %v423, %v421
      %v528 = vpack.c.b16 %v426, %v424
      %v529 = vpack.c.b16 %v427, %v425
      %v530 = vpack.c.b16 %v430, %v428
      %v531 = vpack.c.b16 %v431, %v429
      %v532 = vpack.c.b16 %v434, %v432
      %v533 = vpack.c.b16 %v435, %v433
      %v534 = vpack.c.b16 %v438, %v436
      %v535 = vpack.c.b16 %v439, %v437
      %v536 = vpack.c.b16 %v442, %v440
      %v537 = vpack.c.b16 %v443, %v441
      %v538 = vpack.c.b16 %v446, %v444
      %v539 = vpack.c.b16 %v447, %v445
      %v540 = vpack.c.b16 %v450, %v448
      %v541 = vpack.c.b16 %v451, %v449
      %v542 = vpack.c.b16 %v454, %v452
      %v543 = vpack.c.b16 %v455, %v453
      %v544 = vpack.c.b16 %v458, %v456
      %v545 = vpack.c.b16 %v459, %v457
      %v546 = vpack.c.b16 %v462, %v460
      %v547 = vpack.c.b16 %v463, %v461
      %v548 = vpack.c.b16 %v466, %v464
      %v549 = vpack.c.b16 %v467, %v465
      %v550 = vpack.c.b16 %v470, %v468
      %v551 = vpack.c.b16 %v471, %v469
      %632 = vmatprep.subr.bf16.mxu0 %v473
      %633 = vmatpush1.bf16.msra.mxu0 %v472
      %634 = vmatprep.subr.bf16.mxu0 %v475
      %635 = vmatpush1.bf16.msra.mxu0 %v474
      %636 = vmatprep.subr.bf16.mxu0 %v477
      %637 = vmatpush1.bf16.msra.mxu0 %v476
      %638 = vmatprep.subr.bf16.mxu0 %v479
      %639 = vmatpush1.bf16.msra.mxu0 %v478
      %640 = vmatprep.subr.bf16.mxu0 %v481
      %641 = vmatpush1.bf16.msra.mxu0 %v480
      %642 = vmatprep.subr.bf16.mxu0 %v483
      %643 = vmatpush1.bf16.msra.mxu0 %v482
      %644 = vmatprep.subr.bf16.mxu0 %v485
      %645 = vmatpush1.bf16.msra.mxu0 %v484
      %646 = vmatprep.subr.bf16.mxu0 %v487
      %647 = vmatpush1.bf16.msra.mxu0 %v486
      %648 = vmatprep.subr.bf16.mxu0 %v489
      %649 = vmatpush1.bf16.msra.mxu0 %v488
      %650 = vmatprep.subr.bf16.mxu0 %v491
      %651 = vmatpush1.bf16.msra.mxu0 %v490
      %652 = vmatprep.subr.bf16.mxu0 %v493
      %653 = vmatpush1.bf16.msra.mxu0 %v492
      %654 = vmatprep.subr.bf16.mxu0 %v495
      %655 = vmatpush1.bf16.msra.mxu0 %v494
      %656 = vmatprep.subr.bf16.mxu0 %v497
      %657 = vmatpush1.bf16.msra.mxu0 %v496
      %658 = vmatprep.subr.bf16.mxu0 %v499
      %659 = vmatpush1.bf16.msra.mxu0 %v498
      %660 = vmatprep.subr.bf16.mxu0 %v501
      %661 = vmatpush1.bf16.msra.mxu0 %v500
      %662 = vmatprep.subr.bf16.mxu0 %v503
      %663 = vmatpush1.bf16.msra.mxu0 %v502
      %664 = vmatprep.mubr.bf16.mxu0 %v223
      %665 = vmatmul.mubr.bf16.gmra.mrb[0].mxu0 %v222
      %v666 = vpop.f32.mrb[0].mxu0
      %v667 = vadd.f32 0.0, %v666
      %v668 = vpop.f32.mrb[0].mxu0
      %v669 = vadd.f32 0.0, %v668
      %v670 = vpop.f32.mrb[0].mxu0
      %v671 = vadd.f32 0.0, %v670
      %v672 = vpop.f32.mrb[0].mxu0
      %v673 = vadd.f32 0.0, %v672
      %674 = vmatprep.mubr.bf16.mxu0 %v228
      %675 = vmatmul.mubr.bf16.gmra.mrb[0].mxu0 %v227
      %v676 = vpop.f32.mrb[0].mxu0
      %v677 = vadd.f32 0.0, %v676
      %v678 = vpop.f32.mrb[0].mxu0
      %v679 = vadd.f32 0.0, %v678
      %v680 = vpop.f32.mrb[0].mxu0
      %v681 = vpop.f32.mrb[0].mxu0
      %682 = vdwg.mxu0
      %683 = vmatprep.subr.bf16.mxu0 %v505
      %684 = vmatpush1.bf16.msra.mxu0 %v504
      %685 = vmatprep.subr.bf16.mxu0 %v507
      %686 = vmatpush1.bf16.msra.mxu0 %v506
      %687 = vmatprep.subr.bf16.mxu0 %v509
      %688 = vmatpush1.bf16.msra.mxu0 %v508
      %689 = vmatprep.subr.bf16.mxu0 %v511
      %690 = vmatpush1.bf16.msra.mxu0 %v510
      %691 = vmatprep.subr.bf16.mxu0 %v513
      %692 = vmatpush1.bf16.msra.mxu0 %v512
      %693 = vmatprep.subr.bf16.mxu0 %v515
      %694 = vmatpush1.bf16.msra.mxu0 %v514
      %695 = vmatprep.subr.bf16.mxu0 %v517
      %696 = vmatpush1.bf16.msra.mxu0 %v516
      %697 = vmatprep.subr.bf16.mxu0 %v519
      %698 = vmatpush1.bf16.msra.mxu0 %v518
      %699 = vmatprep.subr.bf16.mxu0 %v521
      %700 = vmatpush1.bf16.msra.mxu0 %v520
      %701 = vmatprep.subr.bf16.mxu0 %v523
      %702 = vmatpush1.bf16.msra.mxu0 %v522
      %703 = vmatprep.subr.bf16.mxu0 %v525
      %704 = vmatpush1.bf16.msra.mxu0 %v524
      %705 = vmatprep.subr.bf16.mxu0 %v527
      %706 = vmatpush1.bf16.msra.mxu0 %v526
      %707 = vmatprep.subr.bf16.mxu0 %v529
      %708 = vmatpush1.bf16.msra.mxu0 %v528
      %709 = vmatprep.subr.bf16.mxu0 %v531
      %710 = vmatpush1.bf16.msra.mxu0 %v530
      %711 = vmatprep.subr.bf16.mxu0 %v533
      %712 = vmatpush1.bf16.msra.mxu0 %v532
      %713 = vmatprep.subr.bf16.mxu0 %v535
      %714 = vmatpush1.bf16.msra.mxu0 %v534
      %715 = vmatprep.mubr.bf16.mxu0 %v225
      %716 = vmatmul.mubr.bf16.gmra.mrb[0].mxu0 %v224
      %v717 = vpop.f32.mrb[0].mxu0
      %v718 = vadd.f32 %v667, %v717
      %v719 = vpop.f32.mrb[0].mxu0
      %v720 = vadd.f32 %v669, %v719
      %v721 = vpop.f32.mrb[0].mxu0
      %v722 = vadd.f32 %v671, %v721
      %v723 = vpop.f32.mrb[0].mxu0
      %v724 = vadd.f32 %v673, %v723
      %725 = vmatprep.mubr.bf16.mxu0 %v230
      %726 = vmatmul.mubr.bf16.gmra.mrb[0].mxu0 %v229
      %v727 = vpop.f32.mrb[0].mxu0
      %v728 = vadd.f32 %v677, %v727
      %v729 = vpop.f32.mrb[0].mxu0
      %v730 = vadd.f32 %v679, %v729
      %v731 = vpop.f32.mrb[0].mxu0
      %v732 = vpop.f32.mrb[0].mxu0
      %733 = vdwg.mxu0
      %734 = vmatprep.subr.bf16.mxu0 %v537
      %735 = vmatpush1.bf16.msra.mxu0 %v536
      %736 = vmatprep.subr.bf16.mxu0 %v539
      %737 = vmatpush1.bf16.msra.mxu0 %v538
      %738 = vmatprep.subr.bf16.mxu0 %v541
      %739 = vmatpush1.bf16.msra.mxu0 %v540
      %740 = vmatprep.subr.bf16.mxu0 %v543
      %741 = vmatpush1.bf16.msra.mxu0 %v542
      %742 = vmatprep.subr.bf16.mxu0 %v545
      %743 = vmatpush1.bf16.msra.mxu0 %v544
      %744 = vmatprep.subr.bf16.mxu0 %v547
      %745 = vmatpush1.bf16.msra.mxu0 %v546
      %746 = vmatprep.subr.bf16.mxu0 %v549
      %747 = vmatpush1.bf16.msra.mxu0 %v548
      %748 = vmatprep.subr.bf16.mxu0 %v551
      %749 = vmatpush1.bf16.msra.mxu0 %v550
      %750 = vmatprep.subr.bf16.mxu0 0
      %751 = vmatpush1.bf16.msra.mxu0 0
      %752 = vmatprep.subr.bf16.mxu0 0
      %753 = vmatpush1.bf16.msra.mxu0 0
      %754 = vmatprep.subr.bf16.mxu0 0
      %755 = vmatpush1.bf16.msra.mxu0 0
      %756 = vmatprep.subr.bf16.mxu0 0
      %757 = vmatpush1.bf16.msra.mxu0 0
      %758 = vmatprep.subr.bf16.mxu0 0
      %759 = vmatpush1.bf16.msra.mxu0 0
      %760 = vmatprep.subr.bf16.mxu0 0
      %761 = vmatpush1.bf16.msra.mxu0 0
      %762 = vmatprep.subr.bf16.mxu0 0
      %763 = vmatpush1.bf16.msra.mxu0 0
      %764 = vmatprep.subr.bf16.mxu0 0
      %765 = vmatpush1.bf16.msra.mxu0 0
      %766 = vmatprep.mubr.bf16.mxu0 0
      %767 = vmatmul.mubr.bf16.gmra.mrb[0].mxu0 %v226
      %v768 = vpop.f32.mrb[0].mxu0
      %v769 = vadd.f32 %v718, %v768
      %v770 = vpop.f32.mrb[0].mxu0
      %v771 = vadd.f32 %v720, %v770
      %v772 = vpop.f32.mrb[0].mxu0
      %v773 = vadd.f32 %v722, %v772
      %v774 = vpop.f32.mrb[0].mxu0
      %v775 = vadd.f32 %v724, %v774
      %776 = vmatprep.mubr.bf16.mxu0 0
      %777 = vmatmul.mubr.bf16.gmra.mrb[0].mxu0 %v231
      %v778 = vpop.f32.mrb[0].mxu0
      %v779 = vadd.f32 %v728, %v778
      %v780 = vpop.f32.mrb[0].mxu0
      %v781 = vadd.f32 %v730, %v780
      %v782 = vpop.f32.mrb[0].mxu0
      %v783 = vpop.f32.mrb[0].mxu0
      %784 = vdwg.mxu0
      %785 = vmatprep.subr.bf16.mxu0 %v473
      %786 = vmatpush1.bf16.msra.mxu0 %v472
      %787 = vmatprep.subr.bf16.mxu0 %v475
      %788 = vmatpush1.bf16.msra.mxu0 %v474
      %789 = vmatprep.subr.bf16.mxu0 %v477
      %790 = vmatpush1.bf16.msra.mxu0 %v476
      %791 = vmatprep.subr.bf16.mxu0 %v479
      %792 = vmatpush1.bf16.msra.mxu0 %v478
      %793 = vmatprep.subr.bf16.mxu0 %v481
      %794 = vmatpush1.bf16.msra.mxu0 %v480
      %795 = vmatprep.subr.bf16.mxu0 %v483
      %796 = vmatpush1.bf16.msra.mxu0 %v482
      %797 = vmatprep.subr.bf16.mxu0 %v485
      %798 = vmatpush1.bf16.msra.mxu0 %v484
      %799 = vmatprep.subr.bf16.mxu0 %v487
      %800 = vmatpush1.bf16.msra.mxu0 %v486
      %801 = vmatprep.subr.bf16.mxu0 %v489
      %802 = vmatpush1.bf16.msra.mxu0 %v488
      %803 = vmatprep.subr.bf16.mxu0 %v491
      %804 = vmatpush1.bf16.msra.mxu0 %v490
      %805 = vmatprep.subr.bf16.mxu0 %v493
      %806 = vmatpush1.bf16.msra.mxu0 %v492
      %807 = vmatprep.subr.bf16.mxu0 %v495
      %808 = vmatpush1.bf16.msra.mxu0 %v494
      %809 = vmatprep.subr.bf16.mxu0 %v497
      %810 = vmatpush1.bf16.msra.mxu0 %v496
      %811 = vmatprep.subr.bf16.mxu0 %v499
      %812 = vmatpush1.bf16.msra.mxu0 %v498
      %813 = vmatprep.subr.bf16.mxu0 %v501
      %814 = vmatpush1.bf16.msra.mxu0 %v500
      %815 = vmatprep.subr.bf16.mxu0 %v503
      %816 = vmatpush1.bf16.msra.mxu0 %v502
      %817 = vmatprep.mubr.bf16.mxu0 %v183
      %818 = vmatmul.mubr.bf16.gmra.mrb[0].mxu0 %v182
      %v819 = vpop.f32.mrb[0].mxu0
      %v820 = vadd.f32 %v769, %v819
      %v821 = vpop.f32.mrb[0].mxu0
      %v822 = vadd.f32 %v771, %v821
      %v823 = vpop.f32.mrb[0].mxu0
      %v824 = vadd.f32 %v773, %v823
      %v825 = vpop.f32.mrb[0].mxu0
      %v826 = vadd.f32 %v775, %v825
      %827 = vmatprep.mubr.bf16.mxu0 %v188
      %828 = vmatmul.mubr.bf16.gmra.mrb[0].mxu0 %v187
      %v829 = vpop.f32.mrb[0].mxu0
      %v830 = vadd.f32 %v779, %v829
      %v831 = vpop.f32.mrb[0].mxu0
      %v832 = vadd.f32 %v781, %v831
      %v833 = vpop.f32.mrb[0].mxu0
      %v834 = vpop.f32.mrb[0].mxu0
      %835 = vdwg.mxu0
      %836 = vmatprep.subr.bf16.mxu0 %v505
      %837 = vmatpush1.bf16.msra.mxu0 %v504
      %838 = vmatprep.subr.bf16.mxu0 %v507
      %839 = vmatpush1.bf16.msra.mxu0 %v506
      %840 = vmatprep.subr.bf16.mxu0 %v509
      %841 = vmatpush1.bf16.msra.mxu0 %v508
      %842 = vmatprep.subr.bf16.mxu0 %v511
      %843 = vmatpush1.bf16.msra.mxu0 %v510
      %844 = vmatprep.subr.bf16.mxu0 %v513
      %845 = vmatpush1.bf16.msra.mxu0 %v512
      %846 = vmatprep.subr.bf16.mxu0 %v515
      %847 = vmatpush1.bf16.msra.mxu0 %v514
      %848 = vmatprep.subr.bf16.mxu0 %v517
      %849 = vmatpush1.bf16.msra.mxu0 %v516
      %850 = vmatprep.subr.bf16.mxu0 %v519
      %851 = vmatpush1.bf16.msra.mxu0 %v518
      %852 = vmatprep.subr.bf16.mxu0 %v521
      %853 = vmatpush1.bf16.msra.mxu0 %v520
      %854 = vmatprep.subr.bf16.mxu0 %v523
      %855 = vmatpush1.bf16.msra.mxu0 %v522
      %856 = vmatprep.subr.bf16.mxu0 %v525
      %857 = vmatpush1.bf16.msra.mxu0 %v524
      %858 = vmatprep.subr.bf16.mxu0 %v527
      %859 = vmatpush1.bf16.msra.mxu0 %v526
      %860 = vmatprep.subr.bf16.mxu0 %v529
      %861 = vmatpush1.bf16.msra.mxu0 %v528
      %862 = vmatprep.subr.bf16.mxu0 %v531
      %863 = vmatpush1.bf16.msra.mxu0 %v530
      %864 = vmatprep.subr.bf16.mxu0 %v533
      %865 = vmatpush1.bf16.msra.mxu0 %v532
      %866 = vmatprep.subr.bf16.mxu0 %v535
      %867 = vmatpush1.bf16.msra.mxu0 %v534
      %868 = vmatprep.mubr.bf16.mxu0 %v185
      %869 = vmatmul.mubr.bf16.gmra.mrb[0].mxu0 %v184
      %v870 = vpop.f32.mrb[0].mxu0
      %v871 = vadd.f32 %v820, %v870
      %v872 = vpop.f32.mrb[0].mxu0
      %v873 = vadd.f32 %v822, %v872
      %v874 = vpop.f32.mrb[0].mxu0
      %v875 = vadd.f32 %v824, %v874
      %v876 = vpop.f32.mrb[0].mxu0
      %v877 = vadd.f32 %v826, %v876
      %878 = vmatprep.mubr.bf16.mxu0 %v190
      %879 = vmatmul.mubr.bf16.gmra.mrb[0].mxu0 %v189
      %v880 = vpop.f32.mrb[0].mxu0
      %v881 = vadd.f32 %v830, %v880
      %v882 = vpop.f32.mrb[0].mxu0
      %v883 = vadd.f32 %v832, %v882
      %v884 = vpop.f32.mrb[0].mxu0
      %v885 = vpop.f32.mrb[0].mxu0
      %886 = vdwg.mxu0
      %887 = vmatprep.subr.bf16.mxu0 %v537
      %888 = vmatpush1.bf16.msra.mxu0 %v536
      %889 = vmatprep.subr.bf16.mxu0 %v539
      %890 = vmatpush1.bf16.msra.mxu0 %v538
      %891 = vmatprep.subr.bf16.mxu0 %v541
      %892 = vmatpush1.bf16.msra.mxu0 %v540
      %893 = vmatprep.subr.bf16.mxu0 %v543
      %894 = vmatpush1.bf16.msra.mxu0 %v542
      %895 = vmatprep.subr.bf16.mxu0 %v545
      %896 = vmatpush1.bf16.msra.mxu0 %v544
      %897 = vmatprep.subr.bf16.mxu0 %v547
      %898 = vmatpush1.bf16.msra.mxu0 %v546
      %899 = vmatprep.subr.bf16.mxu0 %v549
      %900 = vmatpush1.bf16.msra.mxu0 %v548
      %901 = vmatprep.subr.bf16.mxu0 %v551
      %902 = vmatpush1.bf16.msra.mxu0 %v550
      %903 = vmatprep.subr.bf16.mxu0 0
      %904 = vmatpush1.bf16.msra.mxu0 0
      %905 = vmatprep.subr.bf16.mxu0 0
      %906 = vmatpush1.bf16.msra.mxu0 0
      %907 = vmatprep.subr.bf16.mxu0 0
      %908 = vmatpush1.bf16.msra.mxu0 0
      %909 = vmatprep.subr.bf16.mxu0 0
      %910 = vmatpush1.bf16.msra.mxu0 0
      %911 = vmatprep.subr.bf16.mxu0 0
      %912 = vmatpush1.bf16.msra.mxu0 0
      %913 = vmatprep.subr.bf16.mxu0 0
      %914 = vmatpush1.bf16.msra.mxu0 0
      %915 = vmatprep.subr.bf16.mxu0 0
      %916 = vmatpush1.bf16.msra.mxu0 0
      %917 = vmatprep.subr.bf16.mxu0 0
      %918 = vmatpush1.bf16.msra.mxu0 0
      %919 = vmatprep.mubr.bf16.mxu0 0
      %920 = vmatmul.mubr.bf16.gmra.mrb[0].mxu0 %v186
      %v921 = vpop.f32.mrb[0].mxu0
      %v922 = vadd.f32 %v871, %v921
      %v923 = vpop.f32.mrb[0].mxu0
      %v924 = vadd.f32 %v873, %v923
      %v925 = vpop.f32.mrb[0].mxu0
      %v926 = vadd.f32 %v875, %v925
      %v927 = vpop.f32.mrb[0].mxu0
      %v928 = vadd.f32 %v877, %v927
      %929 = vmatprep.mubr.bf16.mxu0 0
      %930 = vmatmul.mubr.bf16.gmra.mrb[0].mxu0 %v191
      %v931 = vpop.f32.mrb[0].mxu0
      %v932 = vadd.f32 %v881, %v931
      %v933 = vpop.f32.mrb[0].mxu0
      %v934 = vadd.f32 %v883, %v933
      %v935 = vpop.f32.mrb[0].mxu0
      %v936 = vpop.f32.mrb[0].mxu0
      %937 = vdwg.mxu0
      %v938 = vld [vmem:[#allocation10] sm:$0xff]
      %v939 = vld [vmem:[#allocation10 + $0x8] sm:$0xff]
      %v940 = vld [vmem:[#allocation10 + $0x10] sm:$0xff]
      %v941 = vld [vmem:[#allocation10 + $0x18] sm:$0xff]
      %v942 = vld [vmem:[#allocation10 + $0x20] sm:$0xff]
      %v943 = vld [vmem:[#allocation10 + $0x28] sm:$0xff]
      %v944 = vadd.f32 %v938, %v922
      %v945 = vadd.f32 %v939, %v924
      %v946 = vadd.f32 %v940, %v926
      %v947 = vadd.f32 %v941, %v928
      %v948 = vadd.f32 %v942, %v932
      %v949 = vadd.f32 %v943, %v934
      %950 = vst [vmem:[#allocation10] sm:$0xff] %v944
      %951 = vst [vmem:[#allocation10 + $0x8] sm:$0xff] %v945
      %952 = vst [vmem:[#allocation10 + $0x10] sm:$0xff] %v946
      %953 = vst [vmem:[#allocation10 + $0x18] sm:$0xff] %v947
      %954 = vst [vmem:[#allocation10 + $0x20] sm:$0xff] %v948
      %955 = vst [vmem:[#allocation10 + $0x28] sm:$0xff] %v949
    $region25: #{tpu_custom_call.1} parent=1 // pred_fallthru
      _
    // Predicated region
    $region26: #{tpu_custom_call.1} parent=1 // pred_check
      _
    $region27: #{tpu_custom_call.1} parent=1 // pred_check_branch
      %957 = sbr.rel (0) target = $region29
    $region28: #{tpu_custom_call.1} parent=1 // pred_region
      %s959 = ssub.s32 768, 768
      %960 = vsyncadd [#allocation7], %s959
      %s961 = sshll.u32 [#allocation10], 4
      %s962 = int_to_ptr.vmem [resolvable:$true] %s961
      %967 = dma.vmem_to_hbm [thread:$0]  %s962, 768, %s4, [#allocation7], 256, 256, 16
    $region29: #{tpu_custom_call.1} parent=1 // pred_fallthru
      _
    // Predicated region
    $region30: #{tpu_custom_call.1} parent=1 // pred_check
      _
    $region31: #{tpu_custom_call.1} parent=1 // pred_check_branch
      %969 = sbr.rel (0) target = $region33
    $region32: #{tpu_custom_call.1} parent=1 // pred_region
      %970 = dma.done [#allocation7], 768
    $region33: #{tpu_custom_call.1} parent=1 // pred_fallthru
      _
    %971 = vsyncpa [#allocation6], 1
    %972 = vsyncpa [#allocation9], 1
    %973 = vsyncpa [#allocation7], 1

</llo_original>
